<compile_context>
chip_gen: v7x
topology: tpu7x:2x2x1
jax: 0.10.0
libtpu: 0.0.40
codegen_flags: <defaults>
</compile_context>

<pallas_src>
import jax
import jax.numpy as jnp
from jax import lax
from jax.experimental import pallas as pl
from jax.experimental.pallas import tpu as pltpu

K = 5        # conv kernel size
PAD = 2      # conv padding ("same")
CONV_CH = 64
HIDDEN = 128


def _batch_blocking(B, batch_block=None):
    # Pad batch to a multiple of 8 (sublane-full tiles); single block up to
    # 128 rows so the recurrent matmul fills the MXU.  On v7x, >=2 blocks
    # (B >= 256 with the 128 default) are needed for megacore occupancy.
    if batch_block is None:
        batch_block = min(128, ((B + 7) // 8) * 8)
    Bp = ((B + batch_block - 1) // batch_block) * batch_block
    return Bp, batch_block


# --------------------------------------------------------------------------
# Kernel 1: conv1 + ReLU + conv2 + ReLU, fused.  Output h2 (T, Bp, 64) in
# compute_dtype — the 64-channel activations only touch HBM once.
# --------------------------------------------------------------------------
def _conv_stack_kernel(xc_ref, w1_ref, b1_ref, w2_ref, b2_ref, o_ref):
    # xc_ref : (T, Bb, K*Cin)  time-major im2col of the (padded) raw input
    # w1_ref : (K*Cin, 64)     b1_ref: (1, 64)
    # w2_ref : (K*64, 64)      b2_ref: (1, 64)
    # o_ref  : (T, Bb, 64)     conv-stack output (compute_dtype)
    T, Bb, KC = xc_ref.shape
    cdt = w1_ref.dtype                       # matmul compute dtype (f32/bf16)

    # ---- conv1 as one im2col matmul (contraction depth K*Cin) ----
    m1 = xc_ref[...].reshape(T * Bb, KC).astype(cdt)
    h1 = jnp.dot(m1, w1_ref[...], preferred_element_type=jnp.float32)
    h1 = jnp.maximum(h1 + b1_ref[...], 0.0)                    # (T*Bb, 64) f32

    # ---- conv2 as one im2col matmul (contraction depth K*64) ----
    # time-major layout => the K shifted windows are leading-dim slices.
    h1 = h1.reshape(T, Bb, CONV_CH).astype(cdt)
    zp = jnp.zeros((PAD, Bb, CONV_CH), cdt)
    h1p = jnp.concatenate([zp, h1, zp], axis=0)                # (T+2P, Bb, 64)
    cols2 = jnp.concatenate([h1p[k:k + T] for k in range(K)], axis=-1)
    m2 = cols2.reshape(T * Bb, K * CONV_CH)
    h2 = jnp.dot(m2, w2_ref[...], preferred_element_type=jnp.float32)
    h2 = jnp.maximum(h2 + b2_ref[...], 0.0)                    # (T*Bb, 64) f32

    o_ref[...] = h2.reshape(T, Bb, CONV_CH).astype(o_ref.dtype)


def _conv1_im2col(x, Bp):
    # The raw input (Cin channels) is tiny, so its im2col + time-major layout
    # change is done once in plain XLA; the 64-channel activations never
    # leave the fused kernel.
    B, T, Cin = x.shape
    xpad = jnp.pad(x, ((0, Bp - B), (PAD, PAD), (0, 0)))       # (Bp, T+2P, Cin)
    cols = jnp.concatenate([xpad[:, k:k + T, :] for k in range(K)], axis=-1)
    return jnp.transpose(cols, (1, 0, 2))                      # (T, Bp, K*Cin)


def conv_stack(x, params, *, compute_dtype, Bp, batch_block,
               vmem_limit_bytes=None):
    B, T, Cin = x.shape
    xc = _conv1_im2col(x, Bp).astype(compute_dtype)            # (T, Bp, K*Cin)
    w1 = params["conv1_w"].reshape(K * Cin, CONV_CH).astype(compute_dtype)
    w2 = params["conv2_w"].reshape(K * CONV_CH, CONV_CH).astype(compute_dtype)
    b1 = params["conv1_b"].reshape(1, CONV_CH).astype(jnp.float32)
    b2 = params["conv2_b"].reshape(1, CONV_CH).astype(jnp.float32)
    return pl.pallas_call(
        _conv_stack_kernel,
        out_shape=jax.ShapeDtypeStruct((T, Bp, CONV_CH), compute_dtype),
        grid=(Bp // batch_block,),
        in_specs=[
            pl.BlockSpec((T, batch_block, K * Cin), lambda b: (0, b, 0)),
            pl.BlockSpec((K * Cin, CONV_CH), lambda b: (0, 0)),
            pl.BlockSpec((1, CONV_CH), lambda b: (0, 0)),
            pl.BlockSpec((K * CONV_CH, CONV_CH), lambda b: (0, 0)),
            pl.BlockSpec((1, CONV_CH), lambda b: (0, 0)),
        ],
        out_specs=pl.BlockSpec((T, batch_block, CONV_CH), lambda b: (0, b, 0)),
        compiler_params=pltpu.CompilerParams(
            dimension_semantics=("parallel",),
            vmem_limit_bytes=vmem_limit_bytes),
    )(xc, w1, b1, w2, b2)


# --------------------------------------------------------------------------
# Kernel 2: per-chunk input projection (one wide matmul) + LSTM recurrence
# (only h @ W_hh on the serial path) + final-step Linear head.
# Sequence streamed in time chunks; h/c carried in VMEM scratch.
# --------------------------------------------------------------------------
def _lstm_fc_kernel(h2_ref, wih_ref, bl_ref, whh_ref, wfc_ref, bfc_ref,
                    o_ref, h_ref, c_ref):
    # h2_ref : (Tc, Bb, 64) conv output chunk (compute_dtype)
    # wih_ref: (64, 4H)  bl_ref: (1, 4H) (= b_ih + b_hh, f32)
    # whh_ref: (H, 4H)   wfc_ref: (H, NC)  bfc_ref: (1, NC)
    # o_ref  : (Bb, NC)  h_ref/c_ref: (Bb, H) f32 scratch carried over chunks
    t_blk = pl.program_id(1)

    @pl.when(t_blk == 0)
    def _():
        h_ref[...] = jnp.zeros_like(h_ref)
        c_ref[...] = jnp.zeros_like(c_ref)

    Tc, Bb, Cc = h2_ref.shape
    H = whh_ref.shape[0]
    G = wih_ref.shape[1]

    # Input projection for the whole chunk, off the recurrent serial path.
    xp = jnp.dot(h2_ref[...].reshape(Tc * Bb, Cc), wih_ref[...],
                 preferred_element_type=jnp.float32) + bl_ref[...]
    xp = xp.reshape(Tc, Bb, G)                                  # f32

    def step(t, carry):
        # Only the recurrent matmul sits on the serial path.
        # NOTE: f32 h state is rounded to the matmul dtype each step in the
        # bf16 path; error compounds over very long sequences.
        gates = xp[t] + jnp.dot(h_ref[...].astype(whh_ref.dtype),
                                whh_ref[...],
                                preferred_element_type=jnp.float32)
        i_g = jax.nn.sigmoid(gates[:, 0 * H:1 * H])
        f_g = jax.nn.sigmoid(gates[:, 1 * H:2 * H])
        g_g = jnp.tanh(gates[:, 2 * H:3 * H])
        o_g = jax.nn.sigmoid(gates[:, 3 * H:4 * H])
        c_new = f_g * c_ref[...] + i_g * g_g
        h_ref[...] = o_g * jnp.tanh(c_new)
        c_ref[...] = c_new
        return carry

    lax.fori_loop(0, Tc, step, 0, unroll=min(Tc, 8))

    @pl.when(t_blk == pl.num_programs(1) - 1)
    def _():
        logits = jnp.dot(h_ref[...].astype(wfc_ref.dtype), wfc_ref[...],
                         preferred_element_type=jnp.float32) + bfc_ref[...]
        o_ref[...] = logits.astype(o_ref.dtype)


def lstm_fc(h2, params, *, compute_dtype, batch_block, time_chunk=None,
            vmem_limit_bytes=None):
    T, Bp, Cc = h2.shape
    H = HIDDEN
    G = 4 * H
    w_ih = params["lstm_w_ih"].astype(compute_dtype)
    w_hh = params["lstm_w_hh"].astype(compute_dtype)
    w_fc = params["fc_w"].astype(compute_dtype)
    NC = w_fc.shape[1]
    bl = (params["lstm_b_ih"] + params["lstm_b_hh"]
          ).reshape(1, G).astype(jnp.float32)
    b_fc = params["fc_b"].reshape(1, NC).astype(jnp.float32)
    if time_chunk is None:
        # Largest divisor first: fewer grid steps, fewer weight re-reads.
        time_chunk = next(d for d in (64, 32, 16, 8, 4, 2, 1) if T % d == 0)
    assert T % time_chunk == 0 and Bp % batch_block == 0
    grid = (Bp // batch_block, T // time_chunk)
    return pl.pallas_call(
        _lstm_fc_kernel,
        out_shape=jax.ShapeDtypeStruct((Bp, NC), jnp.float32),
        grid=grid,
        in_specs=[
            pl.BlockSpec((time_chunk, batch_block, Cc), lambda b, t: (t, b, 0)),
            pl.BlockSpec((Cc, G), lambda b, t: (0, 0)),
            pl.BlockSpec((1, G), lambda b, t: (0, 0)),
            pl.BlockSpec((H, G), lambda b, t: (0, 0)),
            pl.BlockSpec((H, NC), lambda b, t: (0, 0)),
            pl.BlockSpec((1, NC), lambda b, t: (0, 0)),
        ],
        out_specs=pl.BlockSpec((batch_block, NC), lambda b, t: (b, 0)),
        scratch_shapes=[pltpu.VMEM((batch_block, H), jnp.float32),
                        pltpu.VMEM((batch_block, H), jnp.float32)],
        compiler_params=pltpu.CompilerParams(
            dimension_semantics=("parallel", "arbitrary"),
            vmem_limit_bytes=vmem_limit_bytes),
    )(h2, w_ih, bl, w_hh, w_fc, b_fc)


# --------------------------------------------------------------------------
# Full forward (matches the PyTorch module's semantics).
# --------------------------------------------------------------------------
def deep_conv_lstm_forward(x, params, *, compute_dtype=jnp.bfloat16,
                           batch_block=None, time_chunk=None,
                           vmem_limit_bytes=None):
    # x: (B, T, input_channels) — same as the PyTorch module's input.
    B = x.shape[0]
    Bp, bb = _batch_blocking(B, batch_block)
    h2 = conv_stack(x, params, compute_dtype=compute_dtype, Bp=Bp,
                    batch_block=bb, vmem_limit_bytes=vmem_limit_bytes)
    out = lstm_fc(h2, params, compute_dtype=compute_dtype, batch_block=bb,
                  time_chunk=time_chunk, vmem_limit_bytes=vmem_limit_bytes)
    return out[:B]


# --------------------------------------------------------------------------
# Deterministic parameter init (synthetic; shapes match the torch module,
# conv weights stored as (K, Cin, Cout), lstm W_ih as (Cin, 4H)).
# --------------------------------------------------------------------------
def init_params(key, input_channels, num_classes):
    ks = jax.random.split(key, 10)
    s = 0.1
    return {
        "conv1_w": s * jax.random.normal(ks[0], (K, input_channels, CONV_CH),
                                         jnp.float32),
        "conv1_b": s * jax.random.normal(ks[1], (CONV_CH,), jnp.float32),
        "conv2_w": s * jax.random.normal(ks[2], (K, CONV_CH, CONV_CH),
                                         jnp.float32),
        "conv2_b": s * jax.random.normal(ks[3], (CONV_CH,), jnp.float32),
        "lstm_w_ih": s * jax.random.normal(ks[4], (CONV_CH, 4 * HIDDEN),
                                           jnp.float32),
        "lstm_w_hh": s * jax.random.normal(ks[5], (HIDDEN, 4 * HIDDEN),
                                           jnp.float32),
        "lstm_b_ih": s * jax.random.normal(ks[6], (4 * HIDDEN,), jnp.float32),
        "lstm_b_hh": s * jax.random.normal(ks[7], (4 * HIDDEN,), jnp.float32),
        "fc_w": s * jax.random.normal(ks[8], (HIDDEN, num_classes),
                                      jnp.float32),
        "fc_b": s * jax.random.normal(ks[9], (num_classes,), jnp.float32),
    }


# Pure-JAX reference (same math, no Pallas) for the correctness check.
def ref_forward(x, params):
    def conv(xp, w, b):
        B, T, _ = xp.shape
        xpad = jnp.pad(xp, ((0, 0), (PAD, PAD), (0, 0)))
        out = jnp.zeros((B, T, w.shape[-1]), jnp.float32)
        for k in range(K):
            out = out + jnp.einsum("btc,co->bto", xpad[:, k:k + T, :], w[k])
        return jax.nn.relu(out + b)

    h = conv(x, params["conv1_w"], params["conv1_b"])
    h = conv(h, params["conv2_w"], params["conv2_b"])
    Hn = HIDDEN
    b = params["lstm_b_ih"] + params["lstm_b_hh"]

    def step(carry, x_t):
        hh, cc = carry
        gates = x_t @ params["lstm_w_ih"] + hh @ params["lstm_w_hh"] + b
        i = jax.nn.sigmoid(gates[:, :Hn])
        f = jax.nn.sigmoid(gates[:, Hn:2 * Hn])
        g = jnp.tanh(gates[:, 2 * Hn:3 * Hn])
        o = jax.nn.sigmoid(gates[:, 3 * Hn:])
        cc = f * cc + i * g
        hh = o * jnp.tanh(cc)
        return (hh, cc), None

    B = x.shape[0]
    init = (jnp.zeros((B, Hn), jnp.float32), jnp.zeros((B, Hn), jnp.float32))
    (hh, _), _ = lax.scan(step, init, jnp.transpose(h, (1, 0, 2)))
    return hh @ params["fc_w"] + params["fc_b"]


if __name__ == "__main__":
    B, T, C_IN, NUM_CLASSES = 2, 16, 4, 8
    key = jax.random.PRNGKey(0)
    k_x, k_p = jax.random.split(key)
    x = jax.random.normal(k_x, (B, T, C_IN), jnp.float32)
    params = init_params(k_p, C_IN, NUM_CLASSES)

    ref = jax.block_until_ready(ref_forward(x, params))

    # f32 matmul-operand path (tight check).
    out = jax.block_until_ready(
        deep_conv_lstm_forward(x, params, compute_dtype=jnp.float32))
    assert out.shape == (B, NUM_CLASSES)
    err = jnp.max(jnp.abs(out - ref))
    assert jnp.allclose(out, ref, atol=2e-4, rtol=2e-4), (
        f"f32 max abs err {err}")

    # Default bf16 matmul-operand path (loose check; f32 accum + gate math).
    out_bf = jax.block_until_ready(deep_conv_lstm_forward(x, params))
    err_bf = jnp.max(jnp.abs(out_bf - ref))
    assert jnp.allclose(out_bf, ref, atol=5e-2, rtol=5e-2), (
        f"bf16 max abs err {err_bf}")

    print("KERNEL_OK")
</pallas_src>

<mosaic_0001>
module attributes {stable_mosaic.version = 11 : i64} {
  func.func @_conv_stack_kernel(%arg0: i32, %arg1: memref<16x8x20xf32, #tpu.memory_space<vmem>>, %arg2: memref<20x64xf32, #tpu.memory_space<vmem>>, %arg3: memref<1x64xf32, #tpu.memory_space<vmem>>, %arg4: memref<320x64xf32, #tpu.memory_space<vmem>>, %arg5: memref<1x64xf32, #tpu.memory_space<vmem>>, %arg6: memref<16x8x64xf32, #tpu.memory_space<vmem>>) attributes {dimension_semantics = [#tpu.dimension_semantics<parallel>], iteration_bounds = array<i64: 1>, scalar_prefetch = 0 : i64, scratch_operands = 0 : i64, tpu.core_type = #tpu.core_type<tc>, window_params = [{transform_indices = @transform_0, window_bounds = array<i64: 16, 8, 20>}, {pipeline_mode = #tpu.pipeline_mode<synchronous>, transform_indices = @transform_1, window_bounds = array<i64: 20, 64>}, {pipeline_mode = #tpu.pipeline_mode<synchronous>, transform_indices = @transform_2, window_bounds = array<i64: 1, 64>}, {pipeline_mode = #tpu.pipeline_mode<synchronous>, transform_indices = @transform_3, window_bounds = array<i64: 320, 64>}, {pipeline_mode = #tpu.pipeline_mode<synchronous>, transform_indices = @transform_4, window_bounds = array<i64: 1, 64>}, {transform_indices = @transform_5, window_bounds = array<i64: 16, 8, 64>}]} {
    %c0 = arith.constant 0 : index
    %c0_0 = arith.constant 0 : index
    %c0_1 = arith.constant 0 : index
    %0 = vector.load %arg1[%c0, %c0_0, %c0_1] : memref<16x8x20xf32, #tpu.memory_space<vmem>>, vector<16x8x20xf32>
    %1 = vector.shape_cast %0 : vector<16x8x20xf32> to vector<128x20xf32>
    %c0_2 = arith.constant 0 : index
    %c0_3 = arith.constant 0 : index
    %2 = vector.load %arg2[%c0_2, %c0_3] : memref<20x64xf32, #tpu.memory_space<vmem>>, vector<20x64xf32>
    %cst = arith.constant dense<0.000000e+00> : vector<128x64xf32>
    %3 = tpu.matmul %1, %2, %cst {dimension_numbers = #tpu.dot_dimension_numbers<[1], [0], [0], [1], [0, 0, 1, 1], [], []>} : vector<128x20xf32>, vector<20x64xf32>, vector<128x64xf32> -> vector<128x64xf32>
    %c0_4 = arith.constant 0 : index
    %c0_5 = arith.constant 0 : index
    %4 = vector.load %arg3[%c0_4, %c0_5] : memref<1x64xf32, #tpu.memory_space<vmem>>, vector<1x64xf32>
    %5 = vector.broadcast %4 : vector<1x64xf32> to vector<128x64xf32>
    %6 = arith.addf %3, %5 : vector<128x64xf32>
    %cst_6 = arith.constant 0.000000e+00 : f32
    %7 = vector.broadcast %cst_6 : f32 to vector<128x64xf32>
    %8 = arith.maximumf %6, %7 : vector<128x64xf32>
    %9 = vector.shape_cast %8 : vector<128x64xf32> to vector<16x8x64xf32>
    %cst_7 = arith.constant 0.000000e+00 : f32
    %10 = vector.broadcast %cst_7 : f32 to vector<2x8x64xf32>
    %11 = tpu.concatenate %10, %9, %10 in 0 : vector<2x8x64xf32>, vector<16x8x64xf32>, vector<2x8x64xf32> -> vector<20x8x64xf32>
    %12 = vector.extract_strided_slice %11 {offsets = [0, 0, 0], sizes = [16, 8, 64], strides = [1, 1, 1]} : vector<20x8x64xf32> to vector<16x8x64xf32>
    %13 = vector.extract_strided_slice %11 {offsets = [1, 0, 0], sizes = [16, 8, 64], strides = [1, 1, 1]} : vector<20x8x64xf32> to vector<16x8x64xf32>
    %14 = vector.extract_strided_slice %11 {offsets = [2, 0, 0], sizes = [16, 8, 64], strides = [1, 1, 1]} : vector<20x8x64xf32> to vector<16x8x64xf32>
    %15 = vector.extract_strided_slice %11 {offsets = [3, 0, 0], sizes = [16, 8, 64], strides = [1, 1, 1]} : vector<20x8x64xf32> to vector<16x8x64xf32>
    %16 = vector.extract_strided_slice %11 {offsets = [4, 0, 0], sizes = [16, 8, 64], strides = [1, 1, 1]} : vector<20x8x64xf32> to vector<16x8x64xf32>
    %17 = tpu.concatenate %12, %13, %14, %15, %16 in 2 : vector<16x8x64xf32>, vector<16x8x64xf32>, vector<16x8x64xf32>, vector<16x8x64xf32>, vector<16x8x64xf32> -> vector<16x8x320xf32>
    %18 = vector.shape_cast %17 : vector<16x8x320xf32> to vector<128x320xf32>
    %c0_8 = arith.constant 0 : index
    %c0_9 = arith.constant 0 : index
    %19 = vector.load %arg4[%c0_8, %c0_9] : memref<320x64xf32, #tpu.memory_space<vmem>>, vector<320x64xf32>
    %cst_10 = arith.constant dense<0.000000e+00> : vector<128x64xf32>
    %20 = tpu.matmul %18, %19, %cst_10 {dimension_numbers = #tpu.dot_dimension_numbers<[1], [0], [0], [1], [0, 0, 1, 1], [], []>} : vector<128x320xf32>, vector<320x64xf32>, vector<128x64xf32> -> vector<128x64xf32>
    %c0_11 = arith.constant 0 : index
    %c0_12 = arith.constant 0 : index
    %21 = vector.load %arg5[%c0_11, %c0_12] : memref<1x64xf32, #tpu.memory_space<vmem>>, vector<1x64xf32>
    %22 = vector.broadcast %21 : vector<1x64xf32> to vector<128x64xf32>
    %23 = arith.addf %20, %22 : vector<128x64xf32>
    %cst_13 = arith.constant 0.000000e+00 : f32
    %24 = vector.broadcast %cst_13 : f32 to vector<128x64xf32>
    %25 = arith.maximumf %23, %24 : vector<128x64xf32>
    %26 = vector.shape_cast %25 : vector<128x64xf32> to vector<16x8x64xf32>
    %c0_14 = arith.constant 0 : index
    %c0_15 = arith.constant 0 : index
    %c0_16 = arith.constant 0 : index
    %27 = vector.load %arg6[%c0_14, %c0_15, %c0_16] : memref<16x8x64xf32, #tpu.memory_space<vmem>>, vector<16x8x64xf32>
    tpu.vector_store %arg6[%c0_14, %c0_15, %c0_16], %26 {strides = array<i32>} : memref<16x8x64xf32, #tpu.memory_space<vmem>>, vector<16x8x64xf32>,
    return
  }
  func.func @transform_0(%arg0: i32) -> (i32, i32, i32) {
    %c0_i32 = arith.constant 0 : i32
    %c0_i32_0 = arith.constant 0 : i32
    %c0_i32_1 = arith.constant 0 : i32
    return %c0_i32, %arg0, %c0_i32_0 : i32, i32, i32
  }
  func.func @transform_1(%arg0: i32) -> (i32, i32) {
    %c0_i32 = arith.constant 0 : i32
    %c0_i32_0 = arith.constant 0 : i32
    %c0_i32_1 = arith.constant 0 : i32
    return %c0_i32, %c0_i32_0 : i32, i32
  }
  func.func @transform_2(%arg0: i32) -> (i32, i32) {
    %c0_i32 = arith.constant 0 : i32
    %c0_i32_0 = arith.constant 0 : i32
    %c0_i32_1 = arith.constant 0 : i32
    return %c0_i32, %c0_i32_0 : i32, i32
  }
  func.func @transform_3(%arg0: i32) -> (i32, i32) {
    %c0_i32 = arith.constant 0 : i32
    %c0_i32_0 = arith.constant 0 : i32
    %c0_i32_1 = arith.constant 0 : i32
    return %c0_i32, %c0_i32_0 : i32, i32
  }
  func.func @transform_4(%arg0: i32) -> (i32, i32) {
    %c0_i32 = arith.constant 0 : i32
    %c0_i32_0 = arith.constant 0 : i32
    %c0_i32_1 = arith.constant 0 : i32
    return %c0_i32, %c0_i32_0 : i32, i32
  }
  func.func @transform_5(%arg0: i32) -> (i32, i32, i32) {
    %c0_i32 = arith.constant 0 : i32
    %c0_i32_0 = arith.constant 0 : i32
    %c0_i32_1 = arith.constant 0 : i32
    return %c0_i32, %arg0, %c0_i32_0 : i32, i32, i32
  }
}

</mosaic_0001>

<llo_original>
// kernel: tpu_custom_call.1
$region0: #{tpu_custom_call.1}
  #allocation0 [shape = 'u32[]', space=smem, size = 0x4, offset = 0x4, fixed_abs, tag = 'smem constant byte address 0x4 - core index']
  #allocation1 [shape = 'u32[144,128]{1,0:T(1,128)}', space=vmem, size = 0x12000, scoped, tag = 'internal scratch']
  %s0 = inlined_call_operand.vmem [shape: f32[16,8,20], index: 0, kind: input, shape index: {}]
  %s1 = inlined_call_operand.vmem [shape: f32[20,64], index: 1, kind: input, shape index: {}]
  %s2 = inlined_call_operand.vmem [shape: f32[1,64], index: 2, kind: input, shape index: {}]
  %s3 = inlined_call_operand.vmem [shape: f32[320,64], index: 3, kind: input, shape index: {}]
  %s4 = inlined_call_operand.vmem [shape: f32[1,64], index: 4, kind: input, shape index: {}]
  %s5 = inlined_call_operand.hbm [shape: f32[16,8,64], index: 5, kind: output, shape index: {}]
  %s6 = sld [smem:[#allocation0]]
  $region30: #{tpu_custom_call.1} parent=0
    _
  %s8 = ssub.s32 1, %s6
  %s9 = scalar_select 0, %s8, %s6
  $region1: #{tpu_custom_call.1} parent=0
    #allocation2 [shape = 'u8[65536]{0}', space=vmem, size = 0x10000, scoped, tag = 'output window, operand 0, single buffered']
    #allocation3 [shape = 's32[1]{0}', space=sflag, size = 0x4, scoped, tag = 'scoped memory for tpu_custom_call.1']
    %10 = vsyncpa [#allocation3], 0
    // Predicated region
    $region2: #{tpu_custom_call.1} parent=1 // pred_check
      _
    $region3: #{tpu_custom_call.1} parent=1 // pred_check_branch
      %12 = sbr.rel (0) target = $region5
    $region4: #{tpu_custom_call.1} parent=1 // pred_region
      _
    $region5: #{tpu_custom_call.1} parent=1 // pred_fallthru
      _
    // Predicated region
    $region6: #{tpu_custom_call.1} parent=1 // pred_check
      _
    $region7: #{tpu_custom_call.1} parent=1 // pred_check_branch
      %14 = sbr.rel (0) target = $region9
    $region8: #{tpu_custom_call.1} parent=1 // pred_region
      _
    $region9: #{tpu_custom_call.1} parent=1 // pred_fallthru
      _
    // Predicated region
    $region10: #{tpu_custom_call.1} parent=1 // pred_check
      _
    $region11: #{tpu_custom_call.1} parent=1 // pred_check_branch
      %16 = sbr.rel (0) target = $region13
    $region12: #{tpu_custom_call.1} parent=1 // pred_region
      _
    $region13: #{tpu_custom_call.1} parent=1 // pred_fallthru
      _
    // Predicated region
    $region14: #{tpu_custom_call.1} parent=1 // pred_check
      _
    $region15: #{tpu_custom_call.1} parent=1 // pred_check_branch
      %18 = sbr.rel (0) target = $region17
    $region16: #{tpu_custom_call.1} parent=1 // pred_region
      _
    $region17: #{tpu_custom_call.1} parent=1 // pred_fallthru
      _
    // Predicated region
    $region18: #{tpu_custom_call.1} parent=1 // pred_check
      _
    $region19: #{tpu_custom_call.1} parent=1 // pred_check_branch
      %20 = sbr.rel (0) target = $region21
    $region20: #{tpu_custom_call.1} parent=1 // pred_region
      _
    $region21: #{tpu_custom_call.1} parent=1 // pred_fallthru
      _
    %v21 = vld [vmem:[%s0] sm:$0xff]
    %v22 = vld [vmem:[%s0 + $0x8] sm:$0xff]
    %v23 = vld [vmem:[%s0 + $0x10] sm:$0xff]
    %v24 = vld [vmem:[%s0 + $0x18] sm:$0xff]
    %v25 = vld [vmem:[%s0 + $0x20] sm:$0xff]
    %v26 = vld [vmem:[%s0 + $0x28] sm:$0xff]
    %v27 = vld [vmem:[%s0 + $0x30] sm:$0xff]
    %v28 = vld [vmem:[%s0 + $0x38] sm:$0xff]
    %v29 = vld [vmem:[%s0 + $0x40] sm:$0xff]
    %v30 = vld [vmem:[%s0 + $0x48] sm:$0xff]
    %v31 = vld [vmem:[%s0 + $0x50] sm:$0xff]
    %v32 = vld [vmem:[%s0 + $0x58] sm:$0xff]
    %v33 = vld [vmem:[%s0 + $0x60] sm:$0xff]
    %v34 = vld [vmem:[%s0 + $0x68] sm:$0xff]
    %v35 = vld [vmem:[%s0 + $0x70] sm:$0xff]
    %v36 = vld [vmem:[%s0 + $0x78] sm:$0xff]
    %v37 = vld [vmem:[%s1] sm:$0xff]
    %v38 = vld [vmem:[%s1 + $0x8] sm:$0xff]
    %v39 = vld [vmem:[%s1 + $0x10] sm:$0xf]
    %v40 = vld [vmem:[%s2] sm:$0x1]
    %v42 = vlaneseq
    %v43 = vshrl.u32 %v42, 7
    %v44 = vsub.s32 0, %v43
    %v45 = vrot.slane %v40, %v44
    %vm47 = vcmask 162816
    %v49 = vsel %vm47, %v21, 0
    %v52 = vsel %vm47, %v22, 0
    %v55 = vsel %vm47, %v23, 0
    %v58 = vsel %vm47, %v24, 0
    %v61 = vsel %vm47, %v25, 0
    %v64 = vsel %vm47, %v26, 0
    %v67 = vsel %vm47, %v27, 0
    %v70 = vsel %vm47, %v28, 0
    %v73 = vsel %vm47, %v29, 0
    %v76 = vsel %vm47, %v30, 0
    %v79 = vsel %vm47, %v31, 0
    %v82 = vsel %vm47, %v32, 0
    %v85 = vsel %vm47, %v33, 0
    %v88 = vsel %vm47, %v34, 0
    %v91 = vsel %vm47, %v35, 0
    %v94 = vsel %vm47, %v36, 0
    %vm96 = vcmask 1043456
    %v98 = vsel %vm96, %v39, 0
    %100 = vmatprep.subr.mxu0 0.0
    %101 = vmatpush1.msra.mxu0 %v37
    %102 = vmatprep.subr.mxu0 0.0
    %103 = vmatpush1.msra.mxu0 %v38
    %104 = vmatprep.subr.mxu0 0.0
    %105 = vmatpush1.msra.mxu0 %v98
    %106 = vmatprep.subr.mxu0 0.0
    %107 = vmatpush1.msra.mxu0 0.0
    %108 = vmatprep.subr.mxu0 0.0
    %109 = vmatpush1.msra.mxu0 0.0
    %110 = vmatprep.subr.mxu0 0.0
    %111 = vmatpush1.msra.mxu0 0.0
    %112 = vmatprep.subr.mxu0 0.0
    %113 = vmatpush1.msra.mxu0 0.0
    %114 = vmatprep.subr.mxu0 0.0
    %115 = vmatpush1.msra.mxu0 0.0
    %116 = vmatprep.subr.mxu0 0.0
    %117 = vmatpush1.msra.mxu0 0.0
    %118 = vmatprep.subr.mxu0 0.0
    %119 = vmatpush1.msra.mxu0 0.0
    %120 = vmatprep.subr.mxu0 0.0
    %121 = vmatpush1.msra.mxu0 0.0
    %122 = vmatprep.subr.mxu0 0.0
    %123 = vmatpush1.msra.mxu0 0.0
    %124 = vmatprep.subr.mxu0 0.0
    %125 = vmatpush1.msra.mxu0 0.0
    %126 = vmatprep.subr.mxu0 0.0
    %127 = vmatpush1.msra.mxu0 0.0
    %128 = vmatprep.subr.mxu0 0.0
    %129 = vmatpush1.msra.mxu0 0.0
    %130 = vmatprep.subr.mxu0 0.0
    %131 = vmatpush1.msra.mxu0 0.0
    %132 = vmatprep.subr.mxu0 0.0
    %133 = vmatpush1.msra.mxu0 0.0
    %134 = vmatprep.subr.mxu0 0.0
    %135 = vmatpush1.msra.mxu0 0.0
    %136 = vmatprep.subr.mxu0 0.0
    %137 = vmatpush1.msra.mxu0 0.0
    %138 = vmatprep.subr.mxu0 0.0
    %139 = vmatpush1.msra.mxu0 0.0
    %140 = vmatprep.subr.mxu0 0.0
    %141 = vmatpush1.msra.mxu0 0.0
    %142 = vmatprep.subr.mxu0 0.0
    %143 = vmatpush1.msra.mxu0 0.0
    %144 = vmatprep.subr.mxu0 0.0
    %145 = vmatpush1.msra.mxu0 0.0
    %146 = vmatprep.subr.mxu0 0.0
    %147 = vmatpush1.msra.mxu0 0.0
    %148 = vmatprep.subr.mxu0 0.0
    %149 = vmatpush1.msra.mxu0 0.0
    %150 = vmatprep.subr.mxu0 0.0
    %151 = vmatpush1.msra.mxu0 0.0
    %152 = vmatprep.subr.mxu0 0.0
    %153 = vmatpush1.msra.mxu0 0.0
    %154 = vmatprep.subr.mxu0 0.0
    %155 = vmatpush1.msra.mxu0 0.0
    %156 = vmatprep.subr.mxu0 0.0
    %157 = vmatpush1.msra.mxu0 0.0
    %158 = vmatprep.subr.mxu0 0.0
    %159 = vmatpush1.msra.mxu0 0.0
    %160 = vmatprep.subr.mxu0 0.0
    %161 = vmatpush1.msra.mxu0 0.0
    %162 = vmatprep.subr.mxu0 0.0
    %163 = vmatpush1.msra.mxu0 0.0
    %164 = vmatprep.mubr.f32.mxu0 0.0
    %165 = vmatmul.mubr.f32.gmra.mrb[0].mxu0 %v49
    %v166 = vpop.f32.mrb[0].mxu0
    %v167 = vadd.f32 %v45, %v166
    %v168 = vpop.f32.mrb[0].mxu0
    %169 = vmatprep.mubr.f32.mxu0 0.0
    %170 = vmatmul.mubr.f32.gmra.mrb[0].mxu0 %v52
    %v171 = vpop.f32.mrb[0].mxu0
    %v172 = vadd.f32 %v45, %v171
    %v173 = vpop.f32.mrb[0].mxu0
    %174 = vmatprep.mubr.f32.mxu0 0.0
    %175 = vmatmul.mubr.f32.gmra.mrb[0].mxu0 %v55
    %v176 = vpop.f32.mrb[0].mxu0
    %v177 = vadd.f32 %v45, %v176
    %v178 = vpop.f32.mrb[0].mxu0
    %179 = vmatprep.mubr.f32.mxu0 0.0
    %180 = vmatmul.mubr.f32.gmra.mrb[0].mxu0 %v58
    %v181 = vpop.f32.mrb[0].mxu0
    %v182 = vadd.f32 %v45, %v181
    %v183 = vpop.f32.mrb[0].mxu0
    %184 = vmatprep.mubr.f32.mxu0 0.0
    %185 = vmatmul.mubr.f32.gmra.mrb[0].mxu0 %v61
    %v186 = vpop.f32.mrb[0].mxu0
    %v187 = vadd.f32 %v45, %v186
    %v188 = vpop.f32.mrb[0].mxu0
    %189 = vmatprep.mubr.f32.mxu0 0.0
    %190 = vmatmul.mubr.f32.gmra.mrb[0].mxu0 %v64
    %v191 = vpop.f32.mrb[0].mxu0
    %v192 = vadd.f32 %v45, %v191
    %v193 = vpop.f32.mrb[0].mxu0
    %194 = vmatprep.mubr.f32.mxu0 0.0
    %195 = vmatmul.mubr.f32.gmra.mrb[0].mxu0 %v67
    %v196 = vpop.f32.mrb[0].mxu0
    %v197 = vadd.f32 %v45, %v196
    %v198 = vpop.f32.mrb[0].mxu0
    %199 = vmatprep.mubr.f32.mxu0 0.0
    %200 = vmatmul.mubr.f32.gmra.mrb[0].mxu0 %v70
    %v201 = vpop.f32.mrb[0].mxu0
    %v202 = vadd.f32 %v45, %v201
    %v203 = vpop.f32.mrb[0].mxu0
    %204 = vmatprep.mubr.f32.mxu0 0.0
    %205 = vmatmul.mubr.f32.gmra.mrb[0].mxu0 %v73
    %v206 = vpop.f32.mrb[0].mxu0
    %v207 = vadd.f32 %v45, %v206
    %v208 = vpop.f32.mrb[0].mxu0
    %209 = vmatprep.mubr.f32.mxu0 0.0
    %210 = vmatmul.mubr.f32.gmra.mrb[0].mxu0 %v76
    %v211 = vpop.f32.mrb[0].mxu0
    %v212 = vadd.f32 %v45, %v211
    %v213 = vpop.f32.mrb[0].mxu0
    %214 = vmatprep.mubr.f32.mxu0 0.0
    %215 = vmatmul.mubr.f32.gmra.mrb[0].mxu0 %v79
    %v216 = vpop.f32.mrb[0].mxu0
    %v217 = vadd.f32 %v45, %v216
    %v218 = vpop.f32.mrb[0].mxu0
    %219 = vmatprep.mubr.f32.mxu0 0.0
    %220 = vmatmul.mubr.f32.gmra.mrb[0].mxu0 %v82
    %v221 = vpop.f32.mrb[0].mxu0
    %v222 = vadd.f32 %v45, %v221
    %v223 = vpop.f32.mrb[0].mxu0
    %224 = vmatprep.mubr.f32.mxu0 0.0
    %225 = vmatmul.mubr.f32.gmra.mrb[0].mxu0 %v85
    %v226 = vpop.f32.mrb[0].mxu0
    %v227 = vadd.f32 %v45, %v226
    %v228 = vpop.f32.mrb[0].mxu0
    %229 = vmatprep.mubr.f32.mxu0 0.0
    %230 = vmatmul.mubr.f32.gmra.mrb[0].mxu0 %v88
    %v231 = vpop.f32.mrb[0].mxu0
    %v232 = vadd.f32 %v45, %v231
    %v233 = vpop.f32.mrb[0].mxu0
    %234 = vmatprep.mubr.f32.mxu0 0.0
    %235 = vmatmul.mubr.f32.gmra.mrb[0].mxu0 %v91
    %v236 = vpop.f32.mrb[0].mxu0
    %v237 = vadd.f32 %v45, %v236
    %v238 = vpop.f32.mrb[0].mxu0
    %239 = vmatprep.mubr.f32.mxu0 0.0
    %240 = vmatmul.mubr.f32.gmra.mrb[0].mxu0 %v94
    %v241 = vpop.f32.mrb[0].mxu0
    %v242 = vadd.f32 %v45, %v241
    %v243 = vpop.f32.mrb[0].mxu0
    %244 = vdwg.mxu0
    %v245 = vmax.f32 %v167, 0.0
    %v246 = vmax.f32 %v172, 0.0
    %v247 = vmax.f32 %v177, 0.0
    %v248 = vmax.f32 %v182, 0.0
    %v249 = vmax.f32 %v187, 0.0
    %v250 = vmax.f32 %v192, 0.0
    %v251 = vmax.f32 %v197, 0.0
    %v252 = vmax.f32 %v202, 0.0
    %v253 = vmax.f32 %v207, 0.0
    %v254 = vmax.f32 %v212, 0.0
    %v255 = vmax.f32 %v217, 0.0
    %v256 = vmax.f32 %v222, 0.0
    %v257 = vmax.f32 %v227, 0.0
    %v258 = vmax.f32 %v232, 0.0
    %v259 = vmax.f32 %v237, 0.0
    %v260 = vmax.f32 %v242, 0.0
    %277 = vrot.lane.b32.xlu0 0.0, 64
    %v278 = vpop.permute.xlu0 %277
    %279 = vrot.lane.b32.xlu0 %v245, 64
    %v280 = vpop.permute.xlu0 %279
    %281 = vrot.lane.b32.xlu0 %v246, 64
    %v282 = vpop.permute.xlu0 %281
    %283 = vrot.lane.b32.xlu0 %v247, 64
    %v284 = vpop.permute.xlu0 %283
    %285 = vrot.lane.b32.xlu0 %v248, 64
    %v286 = vpop.permute.xlu0 %285
    %287 = vrot.lane.b32.xlu0 %v249, 64
    %v288 = vpop.permute.xlu0 %287
    %289 = vrot.lane.b32.xlu0 %v250, 64
    %v290 = vpop.permute.xlu0 %289
    %291 = vrot.lane.b32.xlu0 %v251, 64
    %v292 = vpop.permute.xlu0 %291
    %293 = vrot.lane.b32.xlu0 %v252, 64
    %v294 = vpop.permute.xlu0 %293
    %295 = vrot.lane.b32.xlu0 %v253, 64
    %v296 = vpop.permute.xlu0 %295
    %297 = vrot.lane.b32.xlu0 %v254, 64
    %v298 = vpop.permute.xlu0 %297
    %299 = vrot.lane.b32.xlu0 %v255, 64
    %v300 = vpop.permute.xlu0 %299
    %301 = vrot.lane.b32.xlu0 %v256, 64
    %v302 = vpop.permute.xlu0 %301
    %303 = vrot.lane.b32.xlu0 %v257, 64
    %v304 = vpop.permute.xlu0 %303
    %305 = vrot.lane.b32.xlu0 %v258, 64
    %v306 = vpop.permute.xlu0 %305
    %307 = vrot.lane.b32.xlu0 %v259, 64
    %v308 = vpop.permute.xlu0 %307
    %326 = vrot.lane.b32.xlu0 %v260, 64
    %v327 = vpop.permute.xlu0 %326
    %vm329 = vcmask 523264
    %v330 = vsel %vm329, 0.0, %v278
    %v331 = vsel %vm329, 0.0, %v280
    %v332 = vsel %vm329, %v245, %v282
    %v333 = vsel %vm329, %v246, %v284
    %v334 = vsel %vm329, %v247, %v286
    %v335 = vsel %vm329, %v248, %v288
    %v336 = vsel %vm329, %v249, %v290
    %v337 = vsel %vm329, %v250, %v292
    %v338 = vsel %vm329, %v251, %v294
    %v339 = vsel %vm329, %v252, %v296
    %v340 = vsel %vm329, %v253, %v298
    %v341 = vsel %vm329, %v254, %v300
    %v342 = vsel %vm329, %v255, %v302
    %v343 = vsel %vm329, %v256, %v304
    %v344 = vsel %vm329, %v257, %v306
    %v345 = vsel %vm329, %v258, %v308
    %v346 = vsel %vm329, %v259, %v327
    %v347 = vsel %vm329, %v260, %v278
    %v348 = vld [vmem:[%s3] sm:$0xff]
    %v349 = vld [vmem:[%s3 + $0x8] sm:$0xff]
    %v350 = vld [vmem:[%s3 + $0x10] sm:$0xff]
    %v351 = vld [vmem:[%s3 + $0x18] sm:$0xff]
    %v352 = vld [vmem:[%s3 + $0x20] sm:$0xff]
    %v353 = vld [vmem:[%s3 + $0x28] sm:$0xff]
    %v354 = vld [vmem:[%s3 + $0x30] sm:$0xff]
    %v355 = vld [vmem:[%s3 + $0x38] sm:$0xff]
    %v356 = vld [vmem:[%s3 + $0x40] sm:$0xff]
    %v357 = vld [vmem:[%s3 + $0x48] sm:$0xff]
    %v358 = vld [vmem:[%s3 + $0x50] sm:$0xff]
    %v359 = vld [vmem:[%s3 + $0x58] sm:$0xff]
    %v360 = vld [vmem:[%s3 + $0x60] sm:$0xff]
    %v361 = vld [vmem:[%s3 + $0x68] sm:$0xff]
    %v362 = vld [vmem:[%s3 + $0x70] sm:$0xff]
    %v363 = vld [vmem:[%s3 + $0x78] sm:$0xff]
    %v364 = vld [vmem:[%s3 + $0x80] sm:$0xff]
    %v365 = vld [vmem:[%s3 + $0x88] sm:$0xff]
    %v366 = vld [vmem:[%s3 + $0x90] sm:$0xff]
    %v367 = vld [vmem:[%s3 + $0x98] sm:$0xff]
    %v368 = vld [vmem:[%s3 + $0xa0] sm:$0xff]
    %v369 = vld [vmem:[%s3 + $0xa8] sm:$0xff]
    %v370 = vld [vmem:[%s3 + $0xb0] sm:$0xff]
    %v371 = vld [vmem:[%s3 + $0xb8] sm:$0xff]
    %v372 = vld [vmem:[%s3 + $0xc0] sm:$0xff]
    %v373 = vld [vmem:[%s3 + $0xc8] sm:$0xff]
    %v374 = vld [vmem:[%s3 + $0xd0] sm:$0xff]
    %v375 = vld [vmem:[%s3 + $0xd8] sm:$0xff]
    %v376 = vld [vmem:[%s3 + $0xe0] sm:$0xff]
    %v377 = vld [vmem:[%s3 + $0xe8] sm:$0xff]
    %v378 = vld [vmem:[%s3 + $0xf0] sm:$0xff]
    %v379 = vld [vmem:[%s3 + $0xf8] sm:$0xff]
    %v380 = vld [vmem:[%s3 + $0x100] sm:$0xff]
    %v381 = vld [vmem:[%s3 + $0x108] sm:$0xff]
    %v382 = vld [vmem:[%s3 + $0x110] sm:$0xff]
    %v383 = vld [vmem:[%s3 + $0x118] sm:$0xff]
    %v384 = vld [vmem:[%s3 + $0x120] sm:$0xff]
    %v385 = vld [vmem:[%s3 + $0x128] sm:$0xff]
    %v386 = vld [vmem:[%s3 + $0x130] sm:$0xff]
    %v387 = vld [vmem:[%s3 + $0x138] sm:$0xff]
    %v388 = vld [vmem:[%s4] sm:$0x1]
    %v390 = vlaneseq
    %v391 = vshrl.u32 %v390, 7
    %v392 = vsub.s32 0, %v391
    %v393 = vrot.slane %v388, %v392
    %v395 = vsel %vm329, %v247, 0
    %v397 = vsel %vm329, %v248, 0
    %v399 = vsel %vm329, %v249, 0
    %v401 = vsel %vm329, %v250, 0
    %v403 = vsel %vm329, %v251, 0
    %v405 = vsel %vm329, %v252, 0
    %v407 = vsel %vm329, %v253, 0
    %v409 = vsel %vm329, %v254, 0
    %v411 = vsel %vm329, %v255, 0
    %v413 = vsel %vm329, %v256, 0
    %v415 = vsel %vm329, %v257, 0
    %v417 = vsel %vm329, %v258, 0
    %v419 = vsel %vm329, %v259, 0
    %v421 = vsel %vm329, %v260, 0
    %v423 = vsel %vm329, 0.0, 0
    %425 = vmatprep.subr.mxu0 0.0
    %426 = vmatpush1.msra.mxu0 %v348
    %427 = vmatprep.subr.mxu0 0.0
    %428 = vmatpush1.msra.mxu0 %v349
    %429 = vmatprep.subr.mxu0 0.0
    %430 = vmatpush1.msra.mxu0 %v350
    %431 = vmatprep.subr.mxu0 0.0
    %432 = vmatpush1.msra.mxu0 %v351
    %433 = vmatprep.subr.mxu0 0.0
    %434 = vmatpush1.msra.mxu0 %v352
    %435 = vmatprep.subr.mxu0 0.0
    %436 = vmatpush1.msra.mxu0 %v353
    %437 = vmatprep.subr.mxu0 0.0
    %438 = vmatpush1.msra.mxu0 %v354
    %439 = vmatprep.subr.mxu0 0.0
    %440 = vmatpush1.msra.mxu0 %v355
    %441 = vmatprep.subr.mxu0 0.0
    %442 = vmatpush1.msra.mxu0 %v356
    %443 = vmatprep.subr.mxu0 0.0
    %444 = vmatpush1.msra.mxu0 %v357
    %445 = vmatprep.subr.mxu0 0.0
    %446 = vmatpush1.msra.mxu0 %v358
    %447 = vmatprep.subr.mxu0 0.0
    %448 = vmatpush1.msra.mxu0 %v359
    %449 = vmatprep.subr.mxu0 0.0
    %450 = vmatpush1.msra.mxu0 %v360
    %451 = vmatprep.subr.mxu0 0.0
    %452 = vmatpush1.msra.mxu0 %v361
    %453 = vmatprep.subr.mxu0 0.0
    %454 = vmatpush1.msra.mxu0 %v362
    %455 = vmatprep.subr.mxu0 0.0
    %456 = vmatpush1.msra.mxu0 %v363
    %457 = vmatprep.subr.mxu0 0.0
    %458 = vmatpush1.msra.mxu0 %v364
    %459 = vmatprep.subr.mxu0 0.0
    %460 = vmatpush1.msra.mxu0 %v365
    %461 = vmatprep.subr.mxu0 0.0
    %462 = vmatpush1.msra.mxu0 %v366
    %463 = vmatprep.subr.mxu0 0.0
    %464 = vmatpush1.msra.mxu0 %v367
    %465 = vmatprep.subr.mxu0 0.0
    %466 = vmatpush1.msra.mxu0 %v368
    %467 = vmatprep.subr.mxu0 0.0
    %468 = vmatpush1.msra.mxu0 %v369
    %469 = vmatprep.subr.mxu0 0.0
    %470 = vmatpush1.msra.mxu0 %v370
    %471 = vmatprep.subr.mxu0 0.0
    %472 = vmatpush1.msra.mxu0 %v371
    %473 = vmatprep.subr.mxu0 0.0
    %474 = vmatpush1.msra.mxu0 %v372
    %475 = vmatprep.subr.mxu0 0.0
    %476 = vmatpush1.msra.mxu0 %v373
    %477 = vmatprep.subr.mxu0 0.0
    %478 = vmatpush1.msra.mxu0 %v374
    %479 = vmatprep.subr.mxu0 0.0
    %480 = vmatpush1.msra.mxu0 %v375
    %481 = vmatprep.subr.mxu0 0.0
    %482 = vmatpush1.msra.mxu0 %v376
    %483 = vmatprep.subr.mxu0 0.0
    %484 = vmatpush1.msra.mxu0 %v377
    %485 = vmatprep.subr.mxu0 0.0
    %486 = vmatpush1.msra.mxu0 %v378
    %487 = vmatprep.subr.mxu0 0.0
    %488 = vmatpush1.msra.mxu0 %v379
    %489 = vmatprep.mubr.f32.mxu0 %v332
    %490 = vmatmul.mubr.f32.gmra.mrb[0].mxu0 %v330
    %v491 = vpop.f32.mrb[0].mxu0
    %v492 = vadd.f32 %v393, %v491
    %v493 = vpop.f32.mrb[0].mxu0
    %494 = vmatprep.mubr.f32.mxu0 %v333
    %495 = vmatmul.mubr.f32.gmra.mrb[0].mxu0 %v331
    %v496 = vpop.f32.mrb[0].mxu0
    %v497 = vadd.f32 %v393, %v496
    %v498 = vpop.f32.mrb[0].mxu0
    %499 = vmatprep.mubr.f32.mxu0 %v334
    %500 = vmatmul.mubr.f32.gmra.mrb[0].mxu0 %v332
    %v501 = vpop.f32.mrb[0].mxu0
    %v502 = vadd.f32 %v393, %v501
    %v503 = vpop.f32.mrb[0].mxu0
    %504 = vmatprep.mubr.f32.mxu0 %v335
    %505 = vmatmul.mubr.f32.gmra.mrb[0].mxu0 %v333
    %v506 = vpop.f32.mrb[0].mxu0
    %v507 = vadd.f32 %v393, %v506
    %v508 = vpop.f32.mrb[0].mxu0
    %509 = vmatprep.mubr.f32.mxu0 %v336
    %510 = vmatmul.mubr.f32.gmra.mrb[0].mxu0 %v334
    %v511 = vpop.f32.mrb[0].mxu0
    %v512 = vadd.f32 %v393, %v511
    %v513 = vpop.f32.mrb[0].mxu0
    %514 = vmatprep.mubr.f32.mxu0 %v337
    %515 = vmatmul.mubr.f32.gmra.mrb[0].mxu0 %v335
    %v516 = vpop.f32.mrb[0].mxu0
    %v517 = vadd.f32 %v393, %v516
    %v518 = vpop.f32.mrb[0].mxu0
    %519 = vmatprep.mubr.f32.mxu0 %v338
    %520 = vmatmul.mubr.f32.gmra.mrb[0].mxu0 %v336
    %v521 = vpop.f32.mrb[0].mxu0
    %v522 = vadd.f32 %v393, %v521
    %v523 = vpop.f32.mrb[0].mxu0
    %524 = vmatprep.mubr.f32.mxu0 %v339
    %525 = vmatmul.mubr.f32.gmra.mrb[0].mxu0 %v337
    %v526 = vpop.f32.mrb[0].mxu0
    %v527 = vadd.f32 %v393, %v526
    %v528 = vpop.f32.mrb[0].mxu0
    %529 = vmatprep.mubr.f32.mxu0 %v340
    %530 = vmatmul.mubr.f32.gmra.mrb[0].mxu0 %v338
    %v531 = vpop.f32.mrb[0].mxu0
    %v532 = vadd.f32 %v393, %v531
    %v533 = vpop.f32.mrb[0].mxu0
    %534 = vmatprep.mubr.f32.mxu0 %v341
    %535 = vmatmul.mubr.f32.gmra.mrb[0].mxu0 %v339
    %v536 = vpop.f32.mrb[0].mxu0
    %v537 = vadd.f32 %v393, %v536
    %v538 = vpop.f32.mrb[0].mxu0
    %539 = vmatprep.mubr.f32.mxu0 %v342
    %540 = vmatmul.mubr.f32.gmra.mrb[0].mxu0 %v340
    %v541 = vpop.f32.mrb[0].mxu0
    %v542 = vadd.f32 %v393, %v541
    %v543 = vpop.f32.mrb[0].mxu0
    %544 = vmatprep.mubr.f32.mxu0 %v343
    %545 = vmatmul.mubr.f32.gmra.mrb[0].mxu0 %v341
    %v546 = vpop.f32.mrb[0].mxu0
    %v547 = vadd.f32 %v393, %v546
    %v548 = vpop.f32.mrb[0].mxu0
    %549 = vmatprep.mubr.f32.mxu0 %v344
    %550 = vmatmul.mubr.f32.gmra.mrb[0].mxu0 %v342
    %v551 = vpop.f32.mrb[0].mxu0
    %v552 = vadd.f32 %v393, %v551
    %v553 = vpop.f32.mrb[0].mxu0
    %554 = vmatprep.mubr.f32.mxu0 %v345
    %555 = vmatmul.mubr.f32.gmra.mrb[0].mxu0 %v343
    %v556 = vpop.f32.mrb[0].mxu0
    %v557 = vadd.f32 %v393, %v556
    %v558 = vpop.f32.mrb[0].mxu0
    %559 = vmatprep.mubr.f32.mxu0 %v346
    %560 = vmatmul.mubr.f32.gmra.mrb[0].mxu0 %v344
    %v561 = vpop.f32.mrb[0].mxu0
    %v562 = vadd.f32 %v393, %v561
    %v563 = vpop.f32.mrb[0].mxu0
    %564 = vmatprep.mubr.f32.mxu0 %v347
    %565 = vmatmul.mubr.f32.gmra.mrb[0].mxu0 %v345
    %v566 = vpop.f32.mrb[0].mxu0
    %v567 = vadd.f32 %v393, %v566
    %v568 = vpop.f32.mrb[0].mxu0
    %569 = vdwg.mxu0
    %570 = vmatprep.subr.mxu0 0.0
    %571 = vmatpush1.msra.mxu0 %v380
    %572 = vmatprep.subr.mxu0 0.0
    %573 = vmatpush1.msra.mxu0 %v381
    %574 = vmatprep.subr.mxu0 0.0
    %575 = vmatpush1.msra.mxu0 %v382
    %576 = vmatprep.subr.mxu0 0.0
    %577 = vmatpush1.msra.mxu0 %v383
    %578 = vmatprep.subr.mxu0 0.0
    %579 = vmatpush1.msra.mxu0 %v384
    %580 = vmatprep.subr.mxu0 0.0
    %581 = vmatpush1.msra.mxu0 %v385
    %582 = vmatprep.subr.mxu0 0.0
    %583 = vmatpush1.msra.mxu0 %v386
    %584 = vmatprep.subr.mxu0 0.0
    %585 = vmatpush1.msra.mxu0 %v387
    %586 = vmatprep.subr.mxu0 0.0
    %587 = vmatpush1.msra.mxu0 0.0
    %588 = vmatprep.subr.mxu0 0.0
    %589 = vmatpush1.msra.mxu0 0.0
    %590 = vmatprep.subr.mxu0 0.0
    %591 = vmatpush1.msra.mxu0 0.0
    %592 = vmatprep.subr.mxu0 0.0
    %593 = vmatpush1.msra.mxu0 0.0
    %594 = vmatprep.subr.mxu0 0.0
    %595 = vmatpush1.msra.mxu0 0.0
    %596 = vmatprep.subr.mxu0 0.0
    %597 = vmatpush1.msra.mxu0 0.0
    %598 = vmatprep.subr.mxu0 0.0
    %599 = vmatpush1.msra.mxu0 0.0
    %600 = vmatprep.subr.mxu0 0.0
    %601 = vmatpush1.msra.mxu0 0.0
    %602 = vmatprep.subr.mxu0 0.0
    %603 = vmatpush1.msra.mxu0 0.0
    %604 = vmatprep.subr.mxu0 0.0
    %605 = vmatpush1.msra.mxu0 0.0
    %606 = vmatprep.subr.mxu0 0.0
    %607 = vmatpush1.msra.mxu0 0.0
    %608 = vmatprep.subr.mxu0 0.0
    %609 = vmatpush1.msra.mxu0 0.0
    %610 = vmatprep.subr.mxu0 0.0
    %611 = vmatpush1.msra.mxu0 0.0
    %612 = vmatprep.subr.mxu0 0.0
    %613 = vmatpush1.msra.mxu0 0.0
    %614 = vmatprep.subr.mxu0 0.0
    %615 = vmatpush1.msra.mxu0 0.0
    %616 = vmatprep.subr.mxu0 0.0
    %617 = vmatpush1.msra.mxu0 0.0
    %618 = vmatprep.subr.mxu0 0.0
    %619 = vmatpush1.msra.mxu0 0.0
    %620 = vmatprep.subr.mxu0 0.0
    %621 = vmatpush1.msra.mxu0 0.0
    %622 = vmatprep.subr.mxu0 0.0
    %623 = vmatpush1.msra.mxu0 0.0
    %624 = vmatprep.subr.mxu0 0.0
    %625 = vmatpush1.msra.mxu0 0.0
    %626 = vmatprep.subr.mxu0 0.0
    %627 = vmatpush1.msra.mxu0 0.0
    %628 = vmatprep.subr.mxu0 0.0
    %629 = vmatpush1.msra.mxu0 0.0
    %630 = vmatprep.subr.mxu0 0.0
    %631 = vmatpush1.msra.mxu0 0.0
    %632 = vmatprep.subr.mxu0 0.0
    %633 = vmatpush1.msra.mxu0 0.0
    %634 = vmatprep.mubr.f32.mxu0 0.0
    %635 = vmatmul.mubr.f32.gmra.mrb[0].mxu0 %v395
    %v636 = vpop.f32.mrb[0].mxu0
    %v637 = vadd.f32 %v492, %v636
    %v638 = vpop.f32.mrb[0].mxu0
    %639 = vmatprep.mubr.f32.mxu0 0.0
    %640 = vmatmul.mubr.f32.gmra.mrb[0].mxu0 %v397
    %v641 = vpop.f32.mrb[0].mxu0
    %v642 = vadd.f32 %v497, %v641
    %v643 = vpop.f32.mrb[0].mxu0
    %644 = vmatprep.mubr.f32.mxu0 0.0
    %645 = vmatmul.mubr.f32.gmra.mrb[0].mxu0 %v399
    %v646 = vpop.f32.mrb[0].mxu0
    %v647 = vadd.f32 %v502, %v646
    %v648 = vpop.f32.mrb[0].mxu0
    %649 = vmatprep.mubr.f32.mxu0 0.0
    %650 = vmatmul.mubr.f32.gmra.mrb[0].mxu0 %v401
    %v651 = vpop.f32.mrb[0].mxu0
    %v652 = vadd.f32 %v507, %v651
    %v653 = vpop.f32.mrb[0].mxu0
    %654 = vmatprep.mubr.f32.mxu0 0.0
    %655 = vmatmul.mubr.f32.gmra.mrb[0].mxu0 %v403
    %v656 = vpop.f32.mrb[0].mxu0
    %v657 = vadd.f32 %v512, %v656
    %v658 = vpop.f32.mrb[0].mxu0
    %659 = vmatprep.mubr.f32.mxu0 0.0
    %660 = vmatmul.mubr.f32.gmra.mrb[0].mxu0 %v405
    %v661 = vpop.f32.mrb[0].mxu0
    %v662 = vadd.f32 %v517, %v661
    %v663 = vpop.f32.mrb[0].mxu0
    %664 = vmatprep.mubr.f32.mxu0 0.0
    %665 = vmatmul.mubr.f32.gmra.mrb[0].mxu0 %v407
    %v666 = vpop.f32.mrb[0].mxu0
    %v667 = vadd.f32 %v522, %v666
    %v668 = vpop.f32.mrb[0].mxu0
    %669 = vmatprep.mubr.f32.mxu0 0.0
    %670 = vmatmul.mubr.f32.gmra.mrb[0].mxu0 %v409
    %v671 = vpop.f32.mrb[0].mxu0
    %v672 = vadd.f32 %v527, %v671
    %v673 = vpop.f32.mrb[0].mxu0
    %674 = vmatprep.mubr.f32.mxu0 0.0
    %675 = vmatmul.mubr.f32.gmra.mrb[0].mxu0 %v411
    %v676 = vpop.f32.mrb[0].mxu0
    %v677 = vadd.f32 %v532, %v676
    %v678 = vpop.f32.mrb[0].mxu0
    %679 = vmatprep.mubr.f32.mxu0 0.0
    %680 = vmatmul.mubr.f32.gmra.mrb[0].mxu0 %v413
    %v681 = vpop.f32.mrb[0].mxu0
    %v682 = vadd.f32 %v537, %v681
    %v683 = vpop.f32.mrb[0].mxu0
    %684 = vmatprep.mubr.f32.mxu0 0.0
    %685 = vmatmul.mubr.f32.gmra.mrb[0].mxu0 %v415
    %v686 = vpop.f32.mrb[0].mxu0
    %v687 = vadd.f32 %v542, %v686
    %v688 = vpop.f32.mrb[0].mxu0
    %689 = vmatprep.mubr.f32.mxu0 0.0
    %690 = vmatmul.mubr.f32.gmra.mrb[0].mxu0 %v417
    %v691 = vpop.f32.mrb[0].mxu0
    %v692 = vadd.f32 %v547, %v691
    %v693 = vpop.f32.mrb[0].mxu0
    %694 = vmatprep.mubr.f32.mxu0 0.0
    %695 = vmatmul.mubr.f32.gmra.mrb[0].mxu0 %v419
    %v696 = vpop.f32.mrb[0].mxu0
    %v697 = vadd.f32 %v552, %v696
    %v698 = vpop.f32.mrb[0].mxu0
    %699 = vmatprep.mubr.f32.mxu0 0.0
    %700 = vmatmul.mubr.f32.gmra.mrb[0].mxu0 %v421
    %v701 = vpop.f32.mrb[0].mxu0
    %v702 = vadd.f32 %v557, %v701
    %v703 = vpop.f32.mrb[0].mxu0
    %704 = vmatprep.mubr.f32.mxu0 0.0
    %705 = vmatmul.mubr.f32.gmra.mrb[0].mxu0 %v423
    %v706 = vpop.f32.mrb[0].mxu0
    %v707 = vadd.f32 %v562, %v706
    %v708 = vpop.f32.mrb[0].mxu0
    %709 = vmatprep.mubr.f32.mxu0 0.0
    %710 = vmatmul.mubr.f32.gmra.mrb[0].mxu0 %v423
    %v711 = vpop.f32.mrb[0].mxu0
    %v712 = vadd.f32 %v567, %v711
    %v713 = vpop.f32.mrb[0].mxu0
    %714 = vdwg.mxu0
    %v715 = vmax.f32 %v637, 0.0
    %v716 = vmax.f32 %v642, 0.0
    %v717 = vmax.f32 %v647, 0.0
    %v718 = vmax.f32 %v652, 0.0
    %v719 = vmax.f32 %v657, 0.0
    %v720 = vmax.f32 %v662, 0.0
    %v721 = vmax.f32 %v667, 0.0
    %v722 = vmax.f32 %v672, 0.0
    %v723 = vmax.f32 %v677, 0.0
    %v724 = vmax.f32 %v682, 0.0
    %v725 = vmax.f32 %v687, 0.0
    %v726 = vmax.f32 %v692, 0.0
    %v727 = vmax.f32 %v697, 0.0
    %v728 = vmax.f32 %v702, 0.0
    %v729 = vmax.f32 %v707, 0.0
    %v730 = vmax.f32 %v712, 0.0
    %731 = vst.msk [vmem:[#allocation2] sm:$0xff] %vm329, %v715
    %732 = vst.msk [vmem:[#allocation2 + $0x8] sm:$0xff] %vm329, %v716
    %733 = vst.msk [vmem:[#allocation2 + $0x10] sm:$0xff] %vm329, %v717
    %734 = vst.msk [vmem:[#allocation2 + $0x18] sm:$0xff] %vm329, %v718
    %735 = vst.msk [vmem:[#allocation2 + $0x20] sm:$0xff] %vm329, %v719
    %736 = vst.msk [vmem:[#allocation2 + $0x28] sm:$0xff] %vm329, %v720
    %737 = vst.msk [vmem:[#allocation2 + $0x30] sm:$0xff] %vm329, %v721
    %738 = vst.msk [vmem:[#allocation2 + $0x38] sm:$0xff] %vm329, %v722
    %739 = vst.msk [vmem:[#allocation2 + $0x40] sm:$0xff] %vm329, %v723
    %740 = vst.msk [vmem:[#allocation2 + $0x48] sm:$0xff] %vm329, %v724
    %741 = vst.msk [vmem:[#allocation2 + $0x50] sm:$0xff] %vm329, %v725
    %742 = vst.msk [vmem:[#allocation2 + $0x58] sm:$0xff] %vm329, %v726
    %743 = vst.msk [vmem:[#allocation2 + $0x60] sm:$0xff] %vm329, %v727
    %744 = vst.msk [vmem:[#allocation2 + $0x68] sm:$0xff] %vm329, %v728
    %745 = vst.msk [vmem:[#allocation2 + $0x70] sm:$0xff] %vm329, %v729
    %746 = vst.msk [vmem:[#allocation2 + $0x78] sm:$0xff] %vm329, %v730
    // Predicated region
    $region22: #{tpu_custom_call.1} parent=1 // pred_check
      _
    $region23: #{tpu_custom_call.1} parent=1 // pred_check_branch
      %748 = sbr.rel (0) target = $region25
    $region24: #{tpu_custom_call.1} parent=1 // pred_region
      %s750 = ssub.s32 2048, 2048
      %751 = vsyncadd [#allocation3], %s750
      %s752 = sshll.u32 [#allocation2], 4
      %s753 = int_to_ptr.vmem [resolvable:$true] %s752
      %758 = dma.vmem_to_hbm [thread:$0]  %s753, 2048, %s5, [#allocation3], 128, 128, 8
    $region25: #{tpu_custom_call.1} parent=1 // pred_fallthru
      _
    // Predicated region
    $region26: #{tpu_custom_call.1} parent=1 // pred_check
      _
    $region27: #{tpu_custom_call.1} parent=1 // pred_check_branch
      %760 = sbr.rel (0) target = $region29
    $region28: #{tpu_custom_call.1} parent=1 // pred_region
      %761 = dma.done [#allocation3], 2048
    $region29: #{tpu_custom_call.1} parent=1 // pred_fallthru
      _
    %762 = vsyncpa [#allocation3], 1

</llo_original>
